<compile_context>
chip_gen: v6e
topology: v6e:2x2x1
jax: 0.10.0
libtpu: 0.0.40
codegen_flags: <defaults>
</compile_context>

<pallas_src>
import functools

import jax
import jax.numpy as jnp
from jax.experimental import pallas as pl
from jax.experimental.pallas import tpu as pltpu

HIDDEN = 256
LOG_STD_MIN = -20.0
LOG_STD_MAX = 2.0


def _round_up(x, m):
    return ((x + m - 1) // m) * m


# --------------------------------------------------------------------------
# Kernel
# --------------------------------------------------------------------------
def _actor_kernel(s_ref, w1_ref, b1_ref, w2_ref, b2_ref, wh_ref, bh_ref,
                  out_ref, *, action_dim):
    cdt = w1_ref.dtype  # compute dtype of the matmul operands (bf16 or f32)

    # Layer 1 + ReLU (f32 accumulation on the MXU)
    h = jnp.dot(s_ref[...].astype(cdt), w1_ref[...],
                preferred_element_type=jnp.float32) + b1_ref[...]
    h = jnp.maximum(h, 0.0)

    # Layer 2 + ReLU
    h = jnp.dot(h.astype(cdt), w2_ref[...],
                preferred_element_type=jnp.float32) + b2_ref[...]
    h = jnp.maximum(h, 0.0)

    # Fused heads: columns [0, A) = mu, [A, 2A) = log_std, rest = padding.
    out = jnp.dot(h.astype(cdt), wh_ref[...],
                  preferred_element_type=jnp.float32) + bh_ref[...]

    # Clamp only the log_std lanes (pure VPU select; no cross-lane movement).
    lane = jax.lax.broadcasted_iota(jnp.int32, out.shape, dimension=1)
    is_log_std = (lane >= action_dim) & (lane < 2 * action_dim)
    out = jnp.where(is_log_std, jnp.clip(out, LOG_STD_MIN, LOG_STD_MAX), out)

    out_ref[...] = out.astype(out_ref.dtype)


# --------------------------------------------------------------------------
# One-time parameter preparation (hoisted out of the per-call hot path)
# --------------------------------------------------------------------------
def prepare_actor_params(params, compute_dtype=jnp.bfloat16):
    """Fuse the two heads, pad to a lane-dense width, cast weights for the MXU.

    Call once (outside the jitted forward); pass the result to actor_forward.
    """
    w1, b1, w2, b2, wmu, bmu, wls, bls = params
    A = wmu.shape[1]
    wh = jnp.concatenate([wmu, wls], axis=1)          # [256, 2A]
    bh = jnp.concatenate([bmu, bls], axis=1)          # [1,   2A]
    hpad = _round_up(max(2 * A, 1), 128)
    if hpad != 2 * A:
        wh = jnp.pad(wh, ((0, 0), (0, hpad - 2 * A)))
        bh = jnp.pad(bh, ((0, 0), (0, hpad - 2 * A)))
    return (w1.astype(compute_dtype), b1.astype(jnp.float32),
            w2.astype(compute_dtype), b2.astype(jnp.float32),
            wh.astype(compute_dtype), bh.astype(jnp.float32))


# --------------------------------------------------------------------------
# Forward pass
# --------------------------------------------------------------------------
@functools.partial(jax.jit, static_argnames=("action_dim", "max_batch_tile"))
def actor_forward(state, kparams, *, action_dim, max_batch_tile=512):
    """state: [B, state_dim] float32. Returns (mu, log_std), each [B, action_dim] f32."""
    w1, b1, w2, b2, wh, bh = kparams
    B, state_dim = state.shape
    A = action_dim
    hpad = wh.shape[1]

    # Sublane (8) alignment only — at most 7 extra rows. The real batch
    # tiling is ragged via pl.cdiv: edge blocks read garbage rows (harmless,
    # rows are independent) and their out-of-bounds writes are dropped.
    Bp = _round_up(B, 8)
    if Bp != B:
        state = jnp.pad(state, ((0, Bp - B), (0, 0)))

    # Single grid step whenever the batch fits one tile (no forced split on
    # single-TC chips); otherwise 512-row (256-multiple) tiles for the MXU.
    tile = Bp if Bp <= max_batch_tile else max_batch_tile
    steps = pl.cdiv(Bp, tile)

    state_spec = pl.BlockSpec((tile, state_dim), lambda i: (i, 0))
    rep = lambda a: pl.BlockSpec(a.shape, lambda i: (0, 0))   # grid-invariant
    out_spec = pl.BlockSpec((tile, hpad), lambda i: (i, 0))

    rows = steps * tile
    flops = 2 * rows * (state_dim * HIDDEN + HIDDEN * HIDDEN + HIDDEN * hpad)
    bytes_accessed = (4 * Bp * state_dim                      # state in (f32)
                      + 2 * (state_dim * HIDDEN               # W1 (bf16)
                             + HIDDEN * HIDDEN                # W2 (bf16)
                             + HIDDEN * hpad)                 # Wh (bf16)
                      + 4 * (HIDDEN + HIDDEN + hpad)          # biases (f32)
                      + 4 * Bp * hpad)                        # output (f32)

    out = pl.pallas_call(
        functools.partial(_actor_kernel, action_dim=A),
        out_shape=jax.ShapeDtypeStruct((Bp, hpad), jnp.float32),
        grid_spec=pltpu.PrefetchScalarGridSpec(
            num_scalar_prefetch=0,
            grid=(steps,),
            in_specs=[
                state_spec,
                rep(w1), rep(b1),
                rep(w2), rep(b2),
                rep(wh), rep(bh),
            ],
            out_specs=out_spec,
        ),
        compiler_params=pltpu.CompilerParams(
            dimension_semantics=("parallel",)),
        cost_estimate=pl.CostEstimate(
            flops=flops, transcendentals=0, bytes_accessed=bytes_accessed),
    )(state, w1, b1, w2, b2, wh, bh)

    mu = out[:B, :A]
    log_std = out[:B, A:2 * A]
    return mu, log_std


# --------------------------------------------------------------------------
# Init + reference
# --------------------------------------------------------------------------
def init_actor_params(key, state_dim, action_dim):
    """Deterministic init mimicking nn.Linear default (uniform +/- 1/sqrt(fan_in)).

    Weights returned already transposed to [in, out] for the kernel."""
    def linear(k, fan_in, fan_out):
        kw, kb = jax.random.split(k)
        bound = 1.0 / jnp.sqrt(fan_in)
        w = jax.random.uniform(kw, (fan_in, fan_out), jnp.float32, -bound, bound)
        b = jax.random.uniform(kb, (1, fan_out), jnp.float32, -bound, bound)
        return w, b

    k1, k2, k3, k4 = jax.random.split(key, 4)
    w1, b1 = linear(k1, state_dim, HIDDEN)
    w2, b2 = linear(k2, HIDDEN, HIDDEN)
    wmu, bmu = linear(k3, HIDDEN, action_dim)
    wls, bls = linear(k4, HIDDEN, action_dim)
    return (w1, b1, w2, b2, wmu, bmu, wls, bls)


def _reference_forward(state, params):
    w1, b1, w2, b2, wmu, bmu, wls, bls = params
    x = jnp.maximum(state @ w1 + b1, 0.0)
    x = jnp.maximum(x @ w2 + b2, 0.0)
    mu = x @ wmu + bmu
    log_std = jnp.clip(x @ wls + bls, LOG_STD_MIN, LOG_STD_MAX)
    return mu, log_std


# TODO(synk): evaluate()/get_action() (Normal sampling, tanh squash, log-prob)
# are not part of forward(); they stay as plain JAX ops outside the kernel.

if __name__ == "__main__":
    key = jax.random.PRNGKey(0)
    k_param, k_small, k_mid, k_large = jax.random.split(key, 4)

    state_dim, action_dim = 16, 4
    params = init_actor_params(k_param, state_dim, action_dim)
    kparams = prepare_actor_params(params)          # one-time fuse/pad/bf16

    # bf16 matmuls (f32 accumulation) vs. f32 reference -> loosened tolerance.
    ATOL, RTOL = 3e-2, 3e-2

    # 1) Small batch (single grid step, tiny sublane pad).
    batch = 2
    state = jax.random.normal(k_small, (batch, state_dim), jnp.float32)
    mu, log_std = actor_forward(state, kparams, action_dim=action_dim)
    jax.block_until_ready((mu, log_std))
    mu_ref, ls_ref = _reference_forward(state, params)
    assert mu.shape == (batch, action_dim) and log_std.shape == (batch, action_dim)
    assert jnp.allclose(mu, mu_ref, atol=ATOL, rtol=RTOL)
    assert jnp.allclose(log_std, ls_ref, atol=ATOL, rtol=RTOL)

    # 2) Medium batch (still one grid step; no forced split).
    batch_m = 300
    state_m = jax.random.normal(k_mid, (batch_m, state_dim), jnp.float32)
    mu_m, ls_m = actor_forward(state_m, kparams, action_dim=action_dim)
    jax.block_until_ready((mu_m, ls_m))
    mu_mr, ls_mr = _reference_forward(state_m, params)
    assert mu_m.shape == (batch_m, action_dim)
    assert jnp.allclose(mu_m, mu_mr, atol=ATOL, rtol=RTOL)
    assert jnp.allclose(ls_m, ls_mr, atol=ATOL, rtol=RTOL)

    # 3) Large batch (>max tile: 2 grid steps, ragged cdiv edge block).
    batch_l = 600
    state_l = jax.random.normal(k_large, (batch_l, state_dim), jnp.float32)
    mu_l, ls_l = actor_forward(state_l, kparams, action_dim=action_dim)
    jax.block_until_ready((mu_l, ls_l))
    mu_lr, ls_lr = _reference_forward(state_l, params)
    assert mu_l.shape == (batch_l, action_dim)
    assert jnp.allclose(mu_l, mu_lr, atol=ATOL, rtol=RTOL)
    assert jnp.allclose(ls_l, ls_lr, atol=ATOL, rtol=RTOL)

    print("KERNEL_OK")
</pallas_src>

<mosaic_0001>
module attributes {stable_mosaic.version = 11 : i64} {
  func.func @_actor_kernel(%arg0: i32, %arg1: memref<8x16xf32, #tpu.memory_space<vmem>>, %arg2: memref<16x256xbf16, #tpu.memory_space<vmem>>, %arg3: memref<1x256xf32, #tpu.memory_space<vmem>>, %arg4: memref<256x256xbf16, #tpu.memory_space<vmem>>, %arg5: memref<1x256xf32, #tpu.memory_space<vmem>>, %arg6: memref<256x128xbf16, #tpu.memory_space<vmem>>, %arg7: memref<1x128xf32, #tpu.memory_space<vmem>>, %arg8: memref<8x128xf32, #tpu.memory_space<vmem>>) attributes {dimension_semantics = [#tpu.dimension_semantics<parallel>], iteration_bounds = array<i64: 1>, scalar_prefetch = 0 : i64, scratch_operands = 0 : i64, tpu.core_type = #tpu.core_type<tc>, window_params = [{transform_indices = @transform_0, window_bounds = array<i64: 8, 16>}, {pipeline_mode = #tpu.pipeline_mode<synchronous>, transform_indices = @transform_1, window_bounds = array<i64: 16, 256>}, {pipeline_mode = #tpu.pipeline_mode<synchronous>, transform_indices = @transform_2, window_bounds = array<i64: 1, 256>}, {pipeline_mode = #tpu.pipeline_mode<synchronous>, transform_indices = @transform_3, window_bounds = array<i64: 256, 256>}, {pipeline_mode = #tpu.pipeline_mode<synchronous>, transform_indices = @transform_4, window_bounds = array<i64: 1, 256>}, {pipeline_mode = #tpu.pipeline_mode<synchronous>, transform_indices = @transform_5, window_bounds = array<i64: 256, 128>}, {pipeline_mode = #tpu.pipeline_mode<synchronous>, transform_indices = @transform_6, window_bounds = array<i64: 1, 128>}, {transform_indices = @transform_7, window_bounds = array<i64: 8, 128>}]} {
    %c0 = arith.constant 0 : index
    %c0_0 = arith.constant 0 : index
    %0 = vector.load %arg1[%c0, %c0_0] : memref<8x16xf32, #tpu.memory_space<vmem>>, vector<8x16xf32>
    %1 = arith.truncf %0 : vector<8x16xf32> to vector<8x16xbf16>
    %c0_1 = arith.constant 0 : index
    %c0_2 = arith.constant 0 : index
    %2 = vector.load %arg2[%c0_1, %c0_2] : memref<16x256xbf16, #tpu.memory_space<vmem>>, vector<16x256xbf16>
    %cst = arith.constant dense<0.000000e+00> : vector<8x256xf32>
    %3 = tpu.matmul %1, %2, %cst {dimension_numbers = #tpu.dot_dimension_numbers<[1], [0], [0], [1], [0, 0, 1, 1], [], []>} : vector<8x16xbf16>, vector<16x256xbf16>, vector<8x256xf32> -> vector<8x256xf32>
    %c0_3 = arith.constant 0 : index
    %c0_4 = arith.constant 0 : index
    %4 = vector.load %arg3[%c0_3, %c0_4] : memref<1x256xf32, #tpu.memory_space<vmem>>, vector<1x256xf32>
    %5 = vector.broadcast %4 : vector<1x256xf32> to vector<8x256xf32>
    %6 = arith.addf %3, %5 : vector<8x256xf32>
    %cst_5 = arith.constant 0.000000e+00 : f32
    %7 = vector.broadcast %cst_5 : f32 to vector<8x256xf32>
    %8 = arith.maximumf %6, %7 : vector<8x256xf32>
    %9 = arith.truncf %8 : vector<8x256xf32> to vector<8x256xbf16>
    %c0_6 = arith.constant 0 : index
    %c0_7 = arith.constant 0 : index
    %10 = vector.load %arg4[%c0_6, %c0_7] : memref<256x256xbf16, #tpu.memory_space<vmem>>, vector<256x256xbf16>
    %cst_8 = arith.constant dense<0.000000e+00> : vector<8x256xf32>
    %11 = tpu.matmul %9, %10, %cst_8 {dimension_numbers = #tpu.dot_dimension_numbers<[1], [0], [0], [1], [0, 0, 1, 1], [], []>} : vector<8x256xbf16>, vector<256x256xbf16>, vector<8x256xf32> -> vector<8x256xf32>
    %c0_9 = arith.constant 0 : index
    %c0_10 = arith.constant 0 : index
    %12 = vector.load %arg5[%c0_9, %c0_10] : memref<1x256xf32, #tpu.memory_space<vmem>>, vector<1x256xf32>
    %13 = vector.broadcast %12 : vector<1x256xf32> to vector<8x256xf32>
    %14 = arith.addf %11, %13 : vector<8x256xf32>
    %cst_11 = arith.constant 0.000000e+00 : f32
    %15 = vector.broadcast %cst_11 : f32 to vector<8x256xf32>
    %16 = arith.maximumf %14, %15 : vector<8x256xf32>
    %17 = arith.truncf %16 : vector<8x256xf32> to vector<8x256xbf16>
    %c0_12 = arith.constant 0 : index
    %c0_13 = arith.constant 0 : index
    %18 = vector.load %arg6[%c0_12, %c0_13] : memref<256x128xbf16, #tpu.memory_space<vmem>>, vector<256x128xbf16>
    %cst_14 = arith.constant dense<0.000000e+00> : vector<8x128xf32>
    %19 = tpu.matmul %17, %18, %cst_14 {dimension_numbers = #tpu.dot_dimension_numbers<[1], [0], [0], [1], [0, 0, 1, 1], [], []>} : vector<8x256xbf16>, vector<256x128xbf16>, vector<8x128xf32> -> vector<8x128xf32>
    %c0_15 = arith.constant 0 : index
    %c0_16 = arith.constant 0 : index
    %20 = vector.load %arg7[%c0_15, %c0_16] : memref<1x128xf32, #tpu.memory_space<vmem>>, vector<1x128xf32>
    %21 = vector.broadcast %20 : vector<1x128xf32> to vector<8x128xf32>
    %22 = arith.addf %19, %21 : vector<8x128xf32>
    %23 = tpu.iota {dimensions = array<i32: 1>} : vector<8x128xi32>
    %c4_i32 = arith.constant 4 : i32
    %24 = vector.broadcast %c4_i32 : i32 to vector<8x128xi32>
    %25 = arith.cmpi sge, %23, %24 : vector<8x128xi32>
    %c8_i32 = arith.constant 8 : i32
    %26 = vector.broadcast %c8_i32 : i32 to vector<8x128xi32>
    %27 = arith.cmpi slt, %23, %26 : vector<8x128xi32>
    %28 = arith.andi %25, %27 : vector<8x128xi1>
    %cst_17 = arith.constant -2.000000e+01 : f32
    %cst_18 = arith.constant 2.000000e+00 : f32
    %29 = vector.broadcast %cst_17 : f32 to vector<8x128xf32>
    %30 = arith.maximumf %29, %22 : vector<8x128xf32>
    %31 = vector.broadcast %cst_18 : f32 to vector<8x128xf32>
    %32 = arith.minimumf %31, %30 : vector<8x128xf32>
    %33 = arith.select %28, %32, %22 : vector<8x128xi1>, vector<8x128xf32>
    %c0_19 = arith.constant 0 : index
    %c0_20 = arith.constant 0 : index
    %34 = vector.load %arg8[%c0_19, %c0_20] : memref<8x128xf32, #tpu.memory_space<vmem>>, vector<8x128xf32>
    tpu.vector_store %arg8[%c0_19, %c0_20], %33 {strides = array<i32>} : memref<8x128xf32, #tpu.memory_space<vmem>>, vector<8x128xf32>,
    return
  }
  func.func @transform_0(%arg0: i32) -> (i32, i32) {
    %c0_i32 = arith.constant 0 : i32
    %c0_i32_0 = arith.constant 0 : i32
    return %arg0, %c0_i32 : i32, i32
  }
  func.func @transform_1(%arg0: i32) -> (i32, i32) {
    %c0_i32 = arith.constant 0 : i32
    %c0_i32_0 = arith.constant 0 : i32
    %c0_i32_1 = arith.constant 0 : i32
    return %c0_i32, %c0_i32_0 : i32, i32
  }
  func.func @transform_2(%arg0: i32) -> (i32, i32) {
    %c0_i32 = arith.constant 0 : i32
    %c0_i32_0 = arith.constant 0 : i32
    %c0_i32_1 = arith.constant 0 : i32
    return %c0_i32, %c0_i32_0 : i32, i32
  }
  func.func @transform_3(%arg0: i32) -> (i32, i32) {
    %c0_i32 = arith.constant 0 : i32
    %c0_i32_0 = arith.constant 0 : i32
    %c0_i32_1 = arith.constant 0 : i32
    return %c0_i32, %c0_i32_0 : i32, i32
  }
  func.func @transform_4(%arg0: i32) -> (i32, i32) {
    %c0_i32 = arith.constant 0 : i32
    %c0_i32_0 = arith.constant 0 : i32
    %c0_i32_1 = arith.constant 0 : i32
    return %c0_i32, %c0_i32_0 : i32, i32
  }
  func.func @transform_5(%arg0: i32) -> (i32, i32) {
    %c0_i32 = arith.constant 0 : i32
    %c0_i32_0 = arith.constant 0 : i32
    %c0_i32_1 = arith.constant 0 : i32
    return %c0_i32, %c0_i32_0 : i32, i32
  }
  func.func @transform_6(%arg0: i32) -> (i32, i32) {
    %c0_i32 = arith.constant 0 : i32
    %c0_i32_0 = arith.constant 0 : i32
    %c0_i32_1 = arith.constant 0 : i32
    return %c0_i32, %c0_i32_0 : i32, i32
  }
  func.func @transform_7(%arg0: i32) -> (i32, i32) {
    %c0_i32 = arith.constant 0 : i32
    %c0_i32_0 = arith.constant 0 : i32
    return %arg0, %c0_i32 : i32, i32
  }
}

</mosaic_0001>

<llo_original>
// kernel: actor_forward.1
$region0: #{actor_forward.1}
  #allocation0 [shape = 'u32[]', space=smem, size = 0x4, offset = 0x4, fixed_abs, tag = 'smem constant byte address 0x4 - core index']
  #allocation1 [shape = 'u32[144,128]{1,0:T(1,128)}', space=vmem, size = 0x12000, scoped, tag = 'internal scratch']
  %s0 = inlined_call_operand.vmem [shape: f32[8,16], index: 0, kind: input, shape index: {}]
  %s1 = inlined_call_operand.hbm [shape: bf16[16,256], index: 1, kind: input, shape index: {}]
  %s2 = inlined_call_operand.vmem [shape: f32[1,256], index: 2, kind: input, shape index: {}]
  %s3 = inlined_call_operand.hbm [shape: bf16[256,256], index: 3, kind: input, shape index: {}]
  %s4 = inlined_call_operand.vmem [shape: f32[1,256], index: 4, kind: input, shape index: {}]
  %s5 = inlined_call_operand.hbm [shape: bf16[256,128], index: 5, kind: input, shape index: {}]
  %s6 = inlined_call_operand.vmem [shape: f32[1,128], index: 6, kind: input, shape index: {}]
  %s7 = inlined_call_operand.vmem [shape: f32[8,128], index: 7, kind: output, shape index: {}]
  %s8 = sld [smem:[#allocation0]]
  $region50: #{actor_forward.1} parent=0
    _
  %s10 = ssub.s32 1, %s8
  %s11 = scalar_select 0, %s10, %s8
  $region1: #{actor_forward.1} parent=0
    #allocation2 [shape = 'u8[8192]{0}', space=vmem, size = 0x2000, scoped, tag = 'input window, operand 1, single buffered']
    #allocation3 [shape = 's32[1]{0}', space=sflag, size = 0x4, scoped, tag = 'scoped memory for actor_forward.1']
    #allocation4 [shape = 'u8[131072]{0}', space=vmem, size = 0x20000, scoped, tag = 'input window, operand 3, single buffered']
    #allocation5 [shape = 's32[1]{0}', space=sflag, size = 0x4, scoped, tag = 'scoped memory for actor_forward.1']
    #allocation6 [shape = 'u8[65536]{0}', space=vmem, size = 0x10000, scoped, tag = 'input window, operand 5, single buffered']
    %12 = vsyncpa [#allocation3], 0
    %13 = vsyncpa [#allocation5], 0
    // Predicated region
    $region2: #{actor_forward.1} parent=1 // pred_check
      _
    $region3: #{actor_forward.1} parent=1 // pred_check_branch
      %15 = sbr.rel (0) target = $region5
    $region4: #{actor_forward.1} parent=1 // pred_region
      _
    $region5: #{actor_forward.1} parent=1 // pred_fallthru
      _
    // Predicated region
    $region6: #{actor_forward.1} parent=1 // pred_check
      _
    $region7: #{actor_forward.1} parent=1 // pred_check_branch
      %17 = sbr.rel (0) target = $region9
    $region8: #{actor_forward.1} parent=1 // pred_region
      %s19 = ssub.s32 256, 256
      %20 = vsyncadd [#allocation3], %s19
      %s21 = sshll.u32 [#allocation2], 4
      %s22 = int_to_ptr.vmem [resolvable:$true] %s21
      %27 = dma.hbm_to_vmem [thread:$0]  %s1, 256, %s22, [#allocation3], 128, 128, 8
    $region9: #{actor_forward.1} parent=1 // pred_fallthru
      _
    // Predicated region
    $region10: #{actor_forward.1} parent=1 // pred_check
      _
    $region11: #{actor_forward.1} parent=1 // pred_check_branch
      %29 = sbr.rel (0) target = $region13
    $region12: #{actor_forward.1} parent=1 // pred_region
      _
    $region13: #{actor_forward.1} parent=1 // pred_fallthru
      _
    // Predicated region
    $region14: #{actor_forward.1} parent=1 // pred_check
      _
    $region15: #{actor_forward.1} parent=1 // pred_check_branch
      %31 = sbr.rel (0) target = $region17
    $region16: #{actor_forward.1} parent=1 // pred_region
      %s33 = ssub.s32 4096, 4096
      %34 = vsyncadd [#allocation5], %s33
      %s35 = sshll.u32 [#allocation4], 4
      %s36 = int_to_ptr.vmem [resolvable:$true] %s35
      %41 = dma.hbm_to_vmem [thread:$0]  %s3, 4096, %s36, [#allocation5], 128, 128, 8
    $region17: #{actor_forward.1} parent=1 // pred_fallthru
      _
    // Predicated region
    $region18: #{actor_forward.1} parent=1 // pred_check
      _
    $region19: #{actor_forward.1} parent=1 // pred_check_branch
      %43 = sbr.rel (0) target = $region21
    $region20: #{actor_forward.1} parent=1 // pred_region
      _
    $region21: #{actor_forward.1} parent=1 // pred_fallthru
      _
    // Predicated region
    $region22: #{actor_forward.1} parent=1 // pred_check
      _
    $region23: #{actor_forward.1} parent=1 // pred_check_branch
      %45 = sbr.rel (0) target = $region25
    $region24: #{actor_forward.1} parent=1 // pred_region
      %s47 = ssub.s32 2048, 2048
      %48 = vsyncadd [#allocation5], %s47
      %s49 = sshll.u32 [#allocation6], 4
      %s50 = int_to_ptr.vmem [resolvable:$true] %s49
      %55 = dma.hbm_to_vmem [thread:$0]  %s5, 2048, %s50, [#allocation5], 64, 64, 4
    $region25: #{actor_forward.1} parent=1 // pred_fallthru
      _
    // Predicated region
    $region26: #{actor_forward.1} parent=1 // pred_check
      _
    $region27: #{actor_forward.1} parent=1 // pred_check_branch
      %57 = sbr.rel (0) target = $region29
    $region28: #{actor_forward.1} parent=1 // pred_region
      _
    $region29: #{actor_forward.1} parent=1 // pred_fallthru
      _
    // Predicated region
    $region30: #{actor_forward.1} parent=1 // pred_check
      _
    $region31: #{actor_forward.1} parent=1 // pred_check_branch
      %59 = sbr.rel (0) target = $region33
    $region32: #{actor_forward.1} parent=1 // pred_region
      %60 = dma.done [#allocation3], 256
    $region33: #{actor_forward.1} parent=1 // pred_fallthru
      _
    // Predicated region
    $region34: #{actor_forward.1} parent=1 // pred_check
      _
    $region35: #{actor_forward.1} parent=1 // pred_check_branch
      %62 = sbr.rel (0) target = $region37
    $region36: #{actor_forward.1} parent=1 // pred_region
      %63 = dma.done [#allocation5], 4096
    $region37: #{actor_forward.1} parent=1 // pred_fallthru
      _
    // Predicated region
    $region38: #{actor_forward.1} parent=1 // pred_check
      _
    $region39: #{actor_forward.1} parent=1 // pred_check_branch
      %65 = sbr.rel (0) target = $region41
    $region40: #{actor_forward.1} parent=1 // pred_region
      %66 = dma.done [#allocation5], 2048
    $region41: #{actor_forward.1} parent=1 // pred_fallthru
      _
    %v68 = vld [vmem:[%s0] sm:$0xff]
    %v69 = vpack.c.bf16 %v68, %v68
    %v70 = vld [vmem:[#allocation2] sm:$0xff]
    %v71 = vld [vmem:[#allocation2 + $0x8] sm:$0xff]
    %v72 = vld [vmem:[%s2] sm:$0x3]
    %v74 = vlaneseq
    %v75 = vshrl.u32 %v74, 7
    %v76 = vsub.s32 0, %v75
    %v77 = vrot.slane %v72, %v76
    %v78 = vlaneseq
    %v79 = vshrl.u32 %v78, 7
    %v80 = vsub.s32 1, %v79
    %v81 = vrot.slane %v72, %v80
    %v86 = vunpack.c.l.b16 %v70
    %v87 = vunpack.c.h.b16 %v70
    %v88 = vunpack.c.l.b16 %v71
    %v89 = vunpack.c.h.b16 %v71
    %v90 = vpack.c.b16 %v88, %v86
    %v91 = vpack.c.b16 %v89, %v87
    %vm94 = vcmask 130048
    %v96 = vsel %vm94, %v69, 0
    %98 = vmatprep.subr.bf16.mxu0 0
    %99 = vmatpush1.bf16.msra.mxu0 0
    %100 = vmatprep.subr.bf16.mxu0 0
    %101 = vmatpush1.bf16.msra.mxu0 0
    %102 = vmatprep.subr.bf16.mxu0 0
    %103 = vmatpush1.bf16.msra.mxu0 0
    %104 = vmatprep.subr.bf16.mxu0 0
    %105 = vmatpush1.bf16.msra.mxu0 0
    %106 = vmatprep.subr.bf16.mxu0 0
    %107 = vmatpush1.bf16.msra.mxu0 0
    %108 = vmatprep.subr.bf16.mxu0 0
    %109 = vmatpush1.bf16.msra.mxu0 0
    %110 = vmatprep.subr.bf16.mxu0 0
    %111 = vmatpush1.bf16.msra.mxu0 0
    %112 = vmatprep.subr.bf16.mxu0 %v91
    %113 = vmatpush1.bf16.msra.mxu0 %v90
    %114 = vmatprep.subr.bf16.mxu0 0
    %115 = vmatpush2.bf16.msra.mxu0 0
    %116 = vmatprep.subr.bf16.mxu0 0
    %117 = vmatpush2.bf16.msra.mxu0 0
    %118 = vmatprep.subr.bf16.mxu0 0
    %119 = vmatpush2.bf16.msra.mxu0 0
    %120 = vmatprep.subr.bf16.mxu0 0
    %121 = vmatpush2.bf16.msra.mxu0 0
    %122 = vmatprep.subr.bf16.mxu0 0
    %123 = vmatpush2.bf16.msra.mxu0 0
    %124 = vmatprep.subr.bf16.mxu0 0
    %125 = vmatpush2.bf16.msra.mxu0 0
    %126 = vmatprep.subr.bf16.mxu0 0
    %127 = vmatpush2.bf16.msra.mxu0 0
    %128 = vmatprep.subr.bf16.mxu0 0
    %129 = vmatpush2.bf16.msra.mxu0 0
    %130 = vmatprep.mubr.bf16.mxu0 0
    %131 = vmatmul.mubr.bf16.gmra.mxu0 %v96
    %v132 = vpop.f32.mrf.mxu0
    %v133 = vadd.f32 %v77, %v132
    %v134 = vpop.f32.mrf.mxu0
    %v135 = vadd.f32 %v81, %v134
    %v136 = vpop.f32.mrf.mxu0
    %v137 = vpop.f32.mrf.mxu0
    %138 = vdwg.mxu0
    %v139 = vmax.f32 %v133, 0.0
    %v140 = vmax.f32 %v135, 0.0
    %v141 = vpack.c.bf16 %v139, %v139
    %v142 = vpack.c.bf16 %v140, %v140
    %v143 = vld [vmem:[#allocation4] sm:$0xff]
    %v144 = vld [vmem:[#allocation4 + $0x8] sm:$0xff]
    %v145 = vld [vmem:[#allocation4 + $0x10] sm:$0xff]
    %v146 = vld [vmem:[#allocation4 + $0x18] sm:$0xff]
    %v147 = vld [vmem:[#allocation4 + $0x20] sm:$0xff]
    %v148 = vld [vmem:[#allocation4 + $0x28] sm:$0xff]
    %v149 = vld [vmem:[#allocation4 + $0x30] sm:$0xff]
    %v150 = vld [vmem:[#allocation4 + $0x38] sm:$0xff]
    %v151 = vld [vmem:[#allocation4 + $0x40] sm:$0xff]
    %v152 = vld [vmem:[#allocation4 + $0x48] sm:$0xff]
    %v153 = vld [vmem:[#allocation4 + $0x50] sm:$0xff]
    %v154 = vld [vmem:[#allocation4 + $0x58] sm:$0xff]
    %v155 = vld [vmem:[#allocation4 + $0x60] sm:$0xff]
    %v156 = vld [vmem:[#allocation4 + $0x68] sm:$0xff]
    %v157 = vld [vmem:[#allocation4 + $0x70] sm:$0xff]
    %v158 = vld [vmem:[#allocation4 + $0x78] sm:$0xff]
    %v159 = vld [vmem:[#allocation4 + $0x80] sm:$0xff]
    %v160 = vld [vmem:[#allocation4 + $0x88] sm:$0xff]
    %v161 = vld [vmem:[#allocation4 + $0x90] sm:$0xff]
    %v162 = vld [vmem:[#allocation4 + $0x98] sm:$0xff]
    %v163 = vld [vmem:[#allocation4 + $0xa0] sm:$0xff]
    %v164 = vld [vmem:[#allocation4 + $0xa8] sm:$0xff]
    %v165 = vld [vmem:[#allocation4 + $0xb0] sm:$0xff]
    %v166 = vld [vmem:[#allocation4 + $0xb8] sm:$0xff]
    %v167 = vld [vmem:[#allocation4 + $0xc0] sm:$0xff]
    %v168 = vld [vmem:[#allocation4 + $0xc8] sm:$0xff]
    %v169 = vld [vmem:[#allocation4 + $0xd0] sm:$0xff]
    %v170 = vld [vmem:[#allocation4 + $0xd8] sm:$0xff]
    %v171 = vld [vmem:[#allocation4 + $0xe0] sm:$0xff]
    %v172 = vld [vmem:[#allocation4 + $0xe8] sm:$0xff]
    %v173 = vld [vmem:[#allocation4 + $0xf0] sm:$0xff]
    %v174 = vld [vmem:[#allocation4 + $0xf8] sm:$0xff]
    %v175 = vld [vmem:[%s4] sm:$0x3]
    %v177 = vlaneseq
    %v178 = vshrl.u32 %v177, 7
    %v179 = vsub.s32 0, %v178
    %v180 = vrot.slane %v175, %v179
    %v181 = vlaneseq
    %v182 = vshrl.u32 %v181, 7
    %v183 = vsub.s32 1, %v182
    %v184 = vrot.slane %v175, %v183
    %v219 = vunpack.c.l.b16 %v143
    %v220 = vunpack.c.h.b16 %v143
    %v221 = vunpack.c.l.b16 %v144
    %v222 = vunpack.c.h.b16 %v144
    %v223 = vunpack.c.l.b16 %v145
    %v224 = vunpack.c.h.b16 %v145
    %v225 = vunpack.c.l.b16 %v146
    %v226 = vunpack.c.h.b16 %v146
    %v227 = vunpack.c.l.b16 %v147
    %v228 = vunpack.c.h.b16 %v147
    %v229 = vunpack.c.l.b16 %v148
    %v230 = vunpack.c.h.b16 %v148
    %v231 = vunpack.c.l.b16 %v149
    %v232 = vunpack.c.h.b16 %v149
    %v233 = vunpack.c.l.b16 %v150
    %v234 = vunpack.c.h.b16 %v150
    %v235 = vunpack.c.l.b16 %v151
    %v236 = vunpack.c.h.b16 %v151
    %v237 = vunpack.c.l.b16 %v152
    %v238 = vunpack.c.h.b16 %v152
    %v239 = vunpack.c.l.b16 %v153
    %v240 = vunpack.c.h.b16 %v153
    %v241 = vunpack.c.l.b16 %v154
    %v242 = vunpack.c.h.b16 %v154
    %v243 = vunpack.c.l.b16 %v155
    %v244 = vunpack.c.h.b16 %v155
    %v245 = vunpack.c.l.b16 %v156
    %v246 = vunpack.c.h.b16 %v156
    %v247 = vunpack.c.l.b16 %v157
    %v248 = vunpack.c.h.b16 %v157
    %v249 = vunpack.c.l.b16 %v158
    %v250 = vunpack.c.h.b16 %v158
    %v251 = vunpack.c.l.b16 %v159
    %v252 = vunpack.c.h.b16 %v159
    %v253 = vunpack.c.l.b16 %v160
    %v254 = vunpack.c.h.b16 %v160
    %v255 = vunpack.c.l.b16 %v161
    %v256 = vunpack.c.h.b16 %v161
    %v257 = vunpack.c.l.b16 %v162
    %v258 = vunpack.c.h.b16 %v162
    %v259 = vunpack.c.l.b16 %v163
    %v260 = vunpack.c.h.b16 %v163
    %v261 = vunpack.c.l.b16 %v164
    %v262 = vunpack.c.h.b16 %v164
    %v263 = vunpack.c.l.b16 %v165
    %v264 = vunpack.c.h.b16 %v165
    %v265 = vunpack.c.l.b16 %v166
    %v266 = vunpack.c.h.b16 %v166
    %v267 = vunpack.c.l.b16 %v167
    %v268 = vunpack.c.h.b16 %v167
    %v269 = vunpack.c.l.b16 %v168
    %v270 = vunpack.c.h.b16 %v168
    %v271 = vunpack.c.l.b16 %v169
    %v272 = vunpack.c.h.b16 %v169
    %v273 = vunpack.c.l.b16 %v170
    %v274 = vunpack.c.h.b16 %v170
    %v275 = vunpack.c.l.b16 %v171
    %v276 = vunpack.c.h.b16 %v171
    %v277 = vunpack.c.l.b16 %v172
    %v278 = vunpack.c.h.b16 %v172
    %v279 = vunpack.c.l.b16 %v173
    %v280 = vunpack.c.h.b16 %v173
    %v281 = vunpack.c.l.b16 %v174
    %v282 = vunpack.c.h.b16 %v174
    %v283 = vpack.c.b16 %v221, %v219
    %v284 = vpack.c.b16 %v222, %v220
    %v285 = vpack.c.b16 %v225, %v223
    %v286 = vpack.c.b16 %v226, %v224
    %v287 = vpack.c.b16 %v229, %v227
    %v288 = vpack.c.b16 %v230, %v228
    %v289 = vpack.c.b16 %v233, %v231
    %v290 = vpack.c.b16 %v234, %v232
    %v291 = vpack.c.b16 %v237, %v235
    %v292 = vpack.c.b16 %v238, %v236
    %v293 = vpack.c.b16 %v241, %v239
    %v294 = vpack.c.b16 %v242, %v240
    %v295 = vpack.c.b16 %v245, %v243
    %v296 = vpack.c.b16 %v246, %v244
    %v297 = vpack.c.b16 %v249, %v247
    %v298 = vpack.c.b16 %v250, %v248
    %v299 = vpack.c.b16 %v253, %v251
    %v300 = vpack.c.b16 %v254, %v252
    %v301 = vpack.c.b16 %v257, %v255
    %v302 = vpack.c.b16 %v258, %v256
    %v303 = vpack.c.b16 %v261, %v259
    %v304 = vpack.c.b16 %v262, %v260
    %v305 = vpack.c.b16 %v265, %v263
    %v306 = vpack.c.b16 %v266, %v264
    %v307 = vpack.c.b16 %v269, %v267
    %v308 = vpack.c.b16 %v270, %v268
    %v309 = vpack.c.b16 %v273, %v271
    %v310 = vpack.c.b16 %v274, %v272
    %v311 = vpack.c.b16 %v277, %v275
    %v312 = vpack.c.b16 %v278, %v276
    %v313 = vpack.c.b16 %v281, %v279
    %v314 = vpack.c.b16 %v282, %v280
    %347 = vmatprep.subr.bf16.mxu0 %v298
    %348 = vmatpush1.bf16.msra.mxu0 %v297
    %349 = vmatprep.subr.bf16.mxu0 %v296
    %350 = vmatpush1.bf16.msra.mxu0 %v295
    %351 = vmatprep.subr.bf16.mxu0 %v294
    %352 = vmatpush1.bf16.msra.mxu0 %v293
    %353 = vmatprep.subr.bf16.mxu0 %v292
    %354 = vmatpush1.bf16.msra.mxu0 %v291
    %355 = vmatprep.subr.bf16.mxu0 %v290
    %356 = vmatpush1.bf16.msra.mxu0 %v289
    %357 = vmatprep.subr.bf16.mxu0 %v288
    %358 = vmatpush1.bf16.msra.mxu0 %v287
    %359 = vmatprep.subr.bf16.mxu0 %v286
    %360 = vmatpush1.bf16.msra.mxu0 %v285
    %361 = vmatprep.subr.bf16.mxu0 %v284
    %362 = vmatpush1.bf16.msra.mxu0 %v283
    %363 = vmatprep.subr.bf16.mxu0 %v314
    %364 = vmatpush2.bf16.msra.mxu0 %v313
    %365 = vmatprep.subr.bf16.mxu0 %v312
    %366 = vmatpush2.bf16.msra.mxu0 %v311
    %367 = vmatprep.subr.bf16.mxu0 %v310
    %368 = vmatpush2.bf16.msra.mxu0 %v309
    %369 = vmatprep.subr.bf16.mxu0 %v308
    %370 = vmatpush2.bf16.msra.mxu0 %v307
    %371 = vmatprep.subr.bf16.mxu0 %v306
    %372 = vmatpush2.bf16.msra.mxu0 %v305
    %373 = vmatprep.subr.bf16.mxu0 %v304
    %374 = vmatpush2.bf16.msra.mxu0 %v303
    %375 = vmatprep.subr.bf16.mxu0 %v302
    %376 = vmatpush2.bf16.msra.mxu0 %v301
    %377 = vmatprep.subr.bf16.mxu0 %v300
    %378 = vmatpush2.bf16.msra.mxu0 %v299
    %379 = vmatprep.mubr.bf16.mxu0 %v142
    %380 = vmatmul.mubr.bf16.gmra.mxu0 %v141
    %v381 = vpop.f32.mrf.mxu0
    %v382 = vadd.f32 %v180, %v381
    %v383 = vpop.f32.mrf.mxu0
    %v384 = vadd.f32 %v184, %v383
    %v385 = vpop.f32.mrf.mxu0
    %v386 = vpop.f32.mrf.mxu0
    %387 = vdwg.mxu0
    %v388 = vmax.f32 %v382, 0.0
    %v389 = vmax.f32 %v384, 0.0
    %v390 = vpack.c.bf16 %v388, %v388
    %v391 = vpack.c.bf16 %v389, %v389
    %v392 = vld [vmem:[#allocation6] sm:$0xf]
    %v393 = vld [vmem:[#allocation6 + $0x4] sm:$0xf]
    %v394 = vld [vmem:[#allocation6 + $0x8] sm:$0xf]
    %v395 = vld [vmem:[#allocation6 + $0xc] sm:$0xf]
    %v396 = vld [vmem:[#allocation6 + $0x10] sm:$0xf]
    %v397 = vld [vmem:[#allocation6 + $0x14] sm:$0xf]
    %v398 = vld [vmem:[#allocation6 + $0x18] sm:$0xf]
    %v399 = vld [vmem:[#allocation6 + $0x1c] sm:$0xf]
    %v400 = vld [vmem:[#allocation6 + $0x20] sm:$0xf]
    %v401 = vld [vmem:[#allocation6 + $0x24] sm:$0xf]
    %v402 = vld [vmem:[#allocation6 + $0x28] sm:$0xf]
    %v403 = vld [vmem:[#allocation6 + $0x2c] sm:$0xf]
    %v404 = vld [vmem:[#allocation6 + $0x30] sm:$0xf]
    %v405 = vld [vmem:[#allocation6 + $0x34] sm:$0xf]
    %v406 = vld [vmem:[#allocation6 + $0x38] sm:$0xf]
    %v407 = vld [vmem:[#allocation6 + $0x3c] sm:$0xf]
    %v408 = vld [vmem:[#allocation6 + $0x40] sm:$0xf]
    %v409 = vld [vmem:[#allocation6 + $0x44] sm:$0xf]
    %v410 = vld [vmem:[#allocation6 + $0x48] sm:$0xf]
    %v411 = vld [vmem:[#allocation6 + $0x4c] sm:$0xf]
    %v412 = vld [vmem:[#allocation6 + $0x50] sm:$0xf]
    %v413 = vld [vmem:[#allocation6 + $0x54] sm:$0xf]
    %v414 = vld [vmem:[#allocation6 + $0x58] sm:$0xf]
    %v415 = vld [vmem:[#allocation6 + $0x5c] sm:$0xf]
    %v416 = vld [vmem:[#allocation6 + $0x60] sm:$0xf]
    %v417 = vld [vmem:[#allocation6 + $0x64] sm:$0xf]
    %v418 = vld [vmem:[#allocation6 + $0x68] sm:$0xf]
    %v419 = vld [vmem:[#allocation6 + $0x6c] sm:$0xf]
    %v420 = vld [vmem:[#allocation6 + $0x70] sm:$0xf]
    %v421 = vld [vmem:[#allocation6 + $0x74] sm:$0xf]
    %v422 = vld [vmem:[#allocation6 + $0x78] sm:$0xf]
    %v423 = vld [vmem:[#allocation6 + $0x7c] sm:$0xf]
    %v424 = vld [vmem:[%s6] sm:$0x1]
    %v426 = vlaneseq
    %v427 = vshrl.u32 %v426, 7
    %v428 = vsub.s32 0, %v427
    %v429 = vrot.slane %v424, %v428
    %v463 = vunpack.c.l.b16 %v392
    %v464 = vunpack.c.l.b16 %v393
    %v465 = vunpack.c.l.b16 %v394
    %v466 = vunpack.c.l.b16 %v395
    %v467 = vunpack.c.l.b16 %v396
    %v468 = vunpack.c.l.b16 %v397
    %v469 = vunpack.c.l.b16 %v398
    %v470 = vunpack.c.l.b16 %v399
    %v471 = vunpack.c.l.b16 %v400
    %v472 = vunpack.c.l.b16 %v401
    %v473 = vunpack.c.l.b16 %v402
    %v474 = vunpack.c.l.b16 %v403
    %v475 = vunpack.c.l.b16 %v404
    %v476 = vunpack.c.l.b16 %v405
    %v477 = vunpack.c.l.b16 %v406
    %v478 = vunpack.c.l.b16 %v407
    %v479 = vunpack.c.l.b16 %v408
    %v480 = vunpack.c.l.b16 %v409
    %v481 = vunpack.c.l.b16 %v410
    %v482 = vunpack.c.l.b16 %v411
    %v483 = vunpack.c.l.b16 %v412
    %v484 = vunpack.c.l.b16 %v413
    %v485 = vunpack.c.l.b16 %v414
    %v486 = vunpack.c.l.b16 %v415
    %v487 = vunpack.c.l.b16 %v416
    %v488 = vunpack.c.l.b16 %v417
    %v489 = vunpack.c.l.b16 %v418
    %v490 = vunpack.c.l.b16 %v419
    %v491 = vunpack.c.l.b16 %v420
    %v492 = vunpack.c.l.b16 %v421
    %v493 = vunpack.c.l.b16 %v422
    %v494 = vunpack.c.l.b16 %v423
    %v495 = vpack.c.b16 %v464, %v463
    %v496 = vpack.c.b16 %v466, %v465
    %v497 = vpack.c.b16 %v468, %v467
    %v498 = vpack.c.b16 %v470, %v469
    %v499 = vpack.c.b16 %v472, %v471
    %v500 = vpack.c.b16 %v474, %v473
    %v501 = vpack.c.b16 %v476, %v475
    %v502 = vpack.c.b16 %v478, %v477
    %v503 = vpack.c.b16 %v480, %v479
    %v504 = vpack.c.b16 %v482, %v481
    %v505 = vpack.c.b16 %v484, %v483
    %v506 = vpack.c.b16 %v486, %v485
    %v507 = vpack.c.b16 %v488, %v487
    %v508 = vpack.c.b16 %v490, %v489
    %v509 = vpack.c.b16 %v492, %v491
    %v510 = vpack.c.b16 %v494, %v493
    %527 = vmatprep.subr.bf16.mxu0 0
    %528 = vmatpush1.bf16.msra.mxu0 %v502
    %529 = vmatprep.subr.bf16.mxu0 0
    %530 = vmatpush1.bf16.msra.mxu0 %v501
    %531 = vmatprep.subr.bf16.mxu0 0
    %532 = vmatpush1.bf16.msra.mxu0 %v500
    %533 = vmatprep.subr.bf16.mxu0 0
    %534 = vmatpush1.bf16.msra.mxu0 %v499
    %535 = vmatprep.subr.bf16.mxu0 0
    %536 = vmatpush1.bf16.msra.mxu0 %v498
    %537 = vmatprep.subr.bf16.mxu0 0
    %538 = vmatpush1.bf16.msra.mxu0 %v497
    %539 = vmatprep.subr.bf16.mxu0 0
    %540 = vmatpush1.bf16.msra.mxu0 %v496
    %541 = vmatprep.subr.bf16.mxu0 0
    %542 = vmatpush1.bf16.msra.mxu0 %v495
    %543 = vmatprep.subr.bf16.mxu0 0
    %544 = vmatpush2.bf16.msra.mxu0 %v510
    %545 = vmatprep.subr.bf16.mxu0 0
    %546 = vmatpush2.bf16.msra.mxu0 %v509
    %547 = vmatprep.subr.bf16.mxu0 0
    %548 = vmatpush2.bf16.msra.mxu0 %v508
    %549 = vmatprep.subr.bf16.mxu0 0
    %550 = vmatpush2.bf16.msra.mxu0 %v507
    %551 = vmatprep.subr.bf16.mxu0 0
    %552 = vmatpush2.bf16.msra.mxu0 %v506
    %553 = vmatprep.subr.bf16.mxu0 0
    %554 = vmatpush2.bf16.msra.mxu0 %v505
    %555 = vmatprep.subr.bf16.mxu0 0
    %556 = vmatpush2.bf16.msra.mxu0 %v504
    %557 = vmatprep.subr.bf16.mxu0 0
    %558 = vmatpush2.bf16.msra.mxu0 %v503
    %559 = vmatprep.mubr.bf16.mxu0 %v391
    %560 = vmatmul.mubr.bf16.gmra.mxu0 %v390
    %v561 = vpop.f32.mrf.mxu0
    %v562 = vadd.f32 %v429, %v561
    %v563 = vpop.f32.mrf.mxu0
    %v564 = vpop.f32.mrf.mxu0
    %v565 = vpop.f32.mrf.mxu0
    %566 = vdwg.mxu0
    %v567 = vlaneseq
    %v568 = vand.u32 %v567, 127
    %vm569 = vcmp.ge.s32.totalorder %v568, 4
    %vm570 = vcmp.lt.s32.totalorder %v568, 8
    %vm571 = vmand %vm569, %vm570
    %v572 = vmax.f32 %v562, -20.0
    %v573 = vmin.f32 %v572, 2.0
    %v574 = vsel %vm571, %v573, %v562
    %575 = vst [vmem:[%s7] sm:$0xff] %v574
    // Predicated region
    $region42: #{actor_forward.1} parent=1 // pred_check
      _
    $region43: #{actor_forward.1} parent=1 // pred_check_branch
      %577 = sbr.rel (0) target = $region45
    $region44: #{actor_forward.1} parent=1 // pred_region
      _
    $region45: #{actor_forward.1} parent=1 // pred_fallthru
      _
    // Predicated region
    $region46: #{actor_forward.1} parent=1 // pred_check
      _
    $region47: #{actor_forward.1} parent=1 // pred_check_branch
      %579 = sbr.rel (0) target = $region49
    $region48: #{actor_forward.1} parent=1 // pred_region
      _
    $region49: #{actor_forward.1} parent=1 // pred_fallthru
      _
    %580 = vsyncpa [#allocation3], 1
    %581 = vsyncpa [#allocation5], 1

</llo_original>
